<compile_context>
chip_gen: v7x
topology: tpu7x:2x2x1
jax: 0.10.0
libtpu: 0.0.40
codegen_flags: <defaults>
</compile_context>

<pallas_src>
import jax
import jax.numpy as jnp
from jax.experimental import pallas as pl
from jax.experimental.pallas import tpu as pltpu

EPS = 1e-5


def autoencoder_kernel(x_ref, w_ref, out_ref):
    """x_ref: (B, P) input padded to P features.
       w_ref: (8, P, P) zero-padded weights, stored (in, out) so h @ W == PyTorch x @ W^T.
       out_ref: (B, 2*P); cols [0:P] = encoded slab, cols [P:2P] = decoded slab."""
    B, P = x_ref.shape
    inv_b = 1.0 / B

    def lin(h, i):
        # (B, P) @ (P, P) on the MXU; padded rows/cols of W are exactly zero.
        return jnp.dot(h, w_ref[i], preferred_element_type=jnp.float32)

    def colsum(v):
        # Sum over the batch (sublane) axis, result broadcast to every row.
        # Power-of-two batch: log2(B) sublane rotations on the XLU + adds on the VPU;
        # keeps the strictly serial MXU chain free of BN-stat matvecs.
        if B > 1 and (B & (B - 1)) == 0:
            r = v
            shift = B // 2
            while shift:
                r = r + pltpu.roll(r, shift, axis=0)
                shift //= 2
            return r
        # Fallback for non-power-of-two batch: cross-sublane reduce.
        return jnp.broadcast_to(jnp.sum(v, axis=0, keepdims=True), v.shape)

    def bn(h):
        # BatchNorm1d training-mode forward: batch mean, biased batch variance,
        # eps=1e-5, identity affine. Single-pass stats in f32 (clamped); fine at
        # small B / f32 — switch to two-pass if tolerances ever tighten.
        s = colsum(h)
        ss = colsum(h * h)
        mean = s * inv_b
        var = jnp.maximum(ss * inv_b - mean * mean, 0.0)
        return (h - mean) * jax.lax.rsqrt(var + EPS)

    h = x_ref[...]

    # ---- encoder: 3 x (Linear -> ReLU -> BN), then Linear to the code ----
    for i in range(3):
        h = bn(jnp.maximum(lin(h, i), 0.0))
    enc = lin(h, 3)            # (B, P); code in cols [0:R], exact zeros elsewhere

    # ---- decoder: 3 x (Linear -> ReLU -> BN), then Linear back to input space ----
    h = enc
    for i in range(4, 7):
        h = bn(jnp.maximum(lin(h, i), 0.0))
    dec = lin(h, 7)            # (B, P); reconstruction in cols [0:D]

    # Single unmasked full-width (B, 2P) store: lane-dense writeback.
    out_ref[...] = jnp.concatenate([enc, dec], axis=-1).astype(out_ref.dtype)


def layer_dims(input_size, hidden_size, hidden_rep_size):
    h2, h4 = hidden_size // 2, hidden_size // 4
    return [
        # encoder
        (input_size, hidden_size), (hidden_size, h2), (h2, h4), (h4, hidden_rep_size),
        # decoder
        (hidden_rep_size, h4), (h4, h2), (h2, hidden_size), (hidden_size, input_size),
    ]


def make_packed_params(key, input_size, hidden_size, hidden_rep_size):
    """init_weights: W ~ N(0.1, 0.01), b = 0.  Weights stored (in, out) and zero-padded
    into one (8, P, P) slab so the kernel takes a single parameter operand."""
    dims = layer_dims(input_size, hidden_size, hidden_rep_size)
    P = max(max(d) for d in dims)
    wpack = jnp.zeros((len(dims), P, P), dtype=jnp.float32)
    keys = jax.random.split(key, len(dims))
    for i, (k, (din, dout)) in enumerate(zip(keys, dims)):
        w = 0.1 + 0.01 * jax.random.normal(k, (din, dout), dtype=jnp.float32)
        wpack = wpack.at[i, :din, :dout].set(w)
    return wpack


def autoencoder_dsl_forward(x, wpack, *, input_size, hidden_size, hidden_rep_size):
    # NOTE: valid only at init_weights parameters (zero biases, identity BN affine,
    # training-mode batch statistics) — see TODOs above for trained/loaded params.
    B, D = x.shape
    n_layers, P, _ = wpack.shape
    dims = layer_dims(input_size, hidden_size, hidden_rep_size)

    if D < P:  # pad input features up to the packed width (padded weight rows are zero)
        x = jnp.pad(x, ((0, 0), (0, P - D)))

    out_w = 2 * P  # enc slab | dec slab (lane-dense single writeback; 128 lanes here)
    flops = 2 * B * sum(di * do for di, do in dims) + 6 * 6 * B * P  # layers + BN elementwise
    cost = pl.CostEstimate(
        flops=flops,
        transcendentals=6 * B * P,                             # 6 rsqrt tiles of (B, P)
        bytes_accessed=4 * (B * P + int(wpack.size) + B * out_w),
    )

    out = pl.pallas_call(
        autoencoder_kernel,
        # No grid: single invocation, full-array VMEM operands, no pipeline machinery.
        in_specs=[
            pl.BlockSpec(memory_space=pltpu.MemorySpace.VMEM),
            pl.BlockSpec(memory_space=pltpu.MemorySpace.VMEM),
        ],
        out_specs=pl.BlockSpec(memory_space=pltpu.MemorySpace.VMEM),
        out_shape=jax.ShapeDtypeStruct((B, out_w), jnp.float32),
        cost_estimate=cost,
    )(x, wpack)

    encoded = out[:, :hidden_rep_size]
    decoded = out[:, P:P + input_size]
    return encoded, decoded


def reference_forward(x, wpack, *, input_size, hidden_size, hidden_rep_size):
    """Pure-JAX reference matching the PyTorch module (two-pass BN, unpadded f32 matmuls)."""
    dims = layer_dims(input_size, hidden_size, hidden_rep_size)

    def bn(h):
        mean = jnp.mean(h, axis=0, keepdims=True)
        var = jnp.mean((h - mean) ** 2, axis=0, keepdims=True)
        return (h - mean) / jnp.sqrt(var + EPS)

    def w(i):
        din, dout = dims[i]
        return wpack[i, :din, :dout]

    def mm(a, b):
        # Full f32 precision so the reference matches true PyTorch f32 semantics.
        return jnp.dot(a, b, precision=jax.lax.Precision.HIGHEST)

    h = x
    for i in range(3):
        h = bn(jnp.maximum(mm(h, w(i)), 0.0))
    enc = mm(h, w(3))
    h = enc
    for i in range(4, 7):
        h = bn(jnp.maximum(mm(h, w(i)), 0.0))
    dec = mm(h, w(7))
    return enc, dec


if __name__ == "__main__":
    # Small shapes consistent with the module: batch=8, input_size=64,
    # hidden_size=32 (so hidden/2=16, hidden/4=8), hidden_rep_size=8.
    B, INPUT, HIDDEN, REP = 8, 64, 32, 8

    root = jax.random.PRNGKey(0)
    kx, kp = jax.random.split(root)
    x = jax.random.normal(kx, (B, INPUT), dtype=jnp.float32)
    wpack = make_packed_params(kp, INPUT, HIDDEN, REP)

    encoded, decoded = autoencoder_dsl_forward(
        x, wpack, input_size=INPUT, hidden_size=HIDDEN, hidden_rep_size=REP)
    jax.block_until_ready((encoded, decoded))

    assert encoded.shape == (B, REP)
    assert decoded.shape == (B, INPUT)

    enc_ref, dec_ref = reference_forward(
        x, wpack, input_size=INPUT, hidden_size=HIDDEN, hidden_rep_size=REP)
    assert jnp.allclose(encoded, enc_ref, atol=1e-3, rtol=1e-3)
    assert jnp.allclose(decoded, dec_ref, atol=1e-3, rtol=1e-3)

    print("KERNEL_OK")
</pallas_src>

<mosaic_0001>
module attributes {stable_mosaic.version = 11 : i64} {
  func.func @autoencoder_kernel(%arg0: memref<8x64xf32, #tpu.memory_space<vmem>>, %arg1: memref<8x64x64xf32, #tpu.memory_space<vmem>>, %arg2: memref<8x128xf32, #tpu.memory_space<vmem>>) attributes {dimension_semantics = [], scalar_prefetch = 0 : i64, scratch_operands = 0 : i64, tpu.core_type = #tpu.core_type<tc>} {
    %c0 = arith.constant 0 : index
    %c0_0 = arith.constant 0 : index
    %0 = vector.load %arg0[%c0, %c0_0] : memref<8x64xf32, #tpu.memory_space<vmem>>, vector<8x64xf32>
    %c0_1 = arith.constant 0 : index
    %c0_2 = arith.constant 0 : index
    %c0_3 = arith.constant 0 : index
    %1 = vector.load %arg1[%c0_1, %c0_2, %c0_3] : memref<8x64x64xf32, #tpu.memory_space<vmem>>, vector<1x64x64xf32>
    %2 = vector.shape_cast %1 : vector<1x64x64xf32> to vector<64x64xf32>
    %cst = arith.constant dense<0.000000e+00> : vector<8x64xf32>
    %3 = tpu.matmul %0, %2, %cst {dimension_numbers = #tpu.dot_dimension_numbers<[1], [0], [0], [1], [0, 0, 1, 1], [], []>} : vector<8x64xf32>, vector<64x64xf32>, vector<8x64xf32> -> vector<8x64xf32>
    %cst_4 = arith.constant 0.000000e+00 : f32
    %4 = vector.broadcast %cst_4 : f32 to vector<8x64xf32>
    %5 = arith.maximumf %3, %4 : vector<8x64xf32>
    %c4_i32 = arith.constant 4 : i32
    %6 = tpu.dynamic_rotate %5 by %c4_i32 dim 0 : vector<8x64xf32>, i32 -> vector<8x64xf32>
    %7 = arith.addf %5, %6 : vector<8x64xf32>
    %c2_i32 = arith.constant 2 : i32
    %8 = tpu.dynamic_rotate %7 by %c2_i32 dim 0 : vector<8x64xf32>, i32 -> vector<8x64xf32>
    %9 = arith.addf %7, %8 : vector<8x64xf32>
    %c1_i32 = arith.constant 1 : i32
    %10 = tpu.dynamic_rotate %9 by %c1_i32 dim 0 : vector<8x64xf32>, i32 -> vector<8x64xf32>
    %11 = arith.addf %9, %10 : vector<8x64xf32>
    %12 = arith.mulf %5, %5 : vector<8x64xf32>
    %c4_i32_5 = arith.constant 4 : i32
    %13 = tpu.dynamic_rotate %12 by %c4_i32_5 dim 0 : vector<8x64xf32>, i32 -> vector<8x64xf32>
    %14 = arith.addf %12, %13 : vector<8x64xf32>
    %c2_i32_6 = arith.constant 2 : i32
    %15 = tpu.dynamic_rotate %14 by %c2_i32_6 dim 0 : vector<8x64xf32>, i32 -> vector<8x64xf32>
    %16 = arith.addf %14, %15 : vector<8x64xf32>
    %c1_i32_7 = arith.constant 1 : i32
    %17 = tpu.dynamic_rotate %16 by %c1_i32_7 dim 0 : vector<8x64xf32>, i32 -> vector<8x64xf32>
    %18 = arith.addf %16, %17 : vector<8x64xf32>
    %cst_8 = arith.constant 1.250000e-01 : f32
    %19 = vector.broadcast %cst_8 : f32 to vector<8x64xf32>
    %20 = arith.mulf %11, %19 : vector<8x64xf32>
    %cst_9 = arith.constant 1.250000e-01 : f32
    %21 = vector.broadcast %cst_9 : f32 to vector<8x64xf32>
    %22 = arith.mulf %18, %21 : vector<8x64xf32>
    %23 = arith.mulf %20, %20 : vector<8x64xf32>
    %24 = arith.subf %22, %23 : vector<8x64xf32>
    %cst_10 = arith.constant 0.000000e+00 : f32
    %25 = vector.broadcast %cst_10 : f32 to vector<8x64xf32>
    %26 = arith.maximumf %24, %25 : vector<8x64xf32>
    %27 = arith.subf %5, %20 : vector<8x64xf32>
    %cst_11 = arith.constant 9.99999974E-6 : f32
    %28 = vector.broadcast %cst_11 : f32 to vector<8x64xf32>
    %29 = arith.addf %26, %28 : vector<8x64xf32>
    %30 = math.rsqrt %29 : vector<8x64xf32>
    %31 = arith.mulf %27, %30 : vector<8x64xf32>
    %c1 = arith.constant 1 : index
    %c0_12 = arith.constant 0 : index
    %c0_13 = arith.constant 0 : index
    %32 = vector.load %arg1[%c1, %c0_12, %c0_13] : memref<8x64x64xf32, #tpu.memory_space<vmem>>, vector<1x64x64xf32>
    %33 = vector.shape_cast %32 : vector<1x64x64xf32> to vector<64x64xf32>
    %cst_14 = arith.constant dense<0.000000e+00> : vector<8x64xf32>
    %34 = tpu.matmul %31, %33, %cst_14 {dimension_numbers = #tpu.dot_dimension_numbers<[1], [0], [0], [1], [0, 0, 1, 1], [], []>} : vector<8x64xf32>, vector<64x64xf32>, vector<8x64xf32> -> vector<8x64xf32>
    %cst_15 = arith.constant 0.000000e+00 : f32
    %35 = vector.broadcast %cst_15 : f32 to vector<8x64xf32>
    %36 = arith.maximumf %34, %35 : vector<8x64xf32>
    %c4_i32_16 = arith.constant 4 : i32
    %37 = tpu.dynamic_rotate %36 by %c4_i32_16 dim 0 : vector<8x64xf32>, i32 -> vector<8x64xf32>
    %38 = arith.addf %36, %37 : vector<8x64xf32>
    %c2_i32_17 = arith.constant 2 : i32
    %39 = tpu.dynamic_rotate %38 by %c2_i32_17 dim 0 : vector<8x64xf32>, i32 -> vector<8x64xf32>
    %40 = arith.addf %38, %39 : vector<8x64xf32>
    %c1_i32_18 = arith.constant 1 : i32
    %41 = tpu.dynamic_rotate %40 by %c1_i32_18 dim 0 : vector<8x64xf32>, i32 -> vector<8x64xf32>
    %42 = arith.addf %40, %41 : vector<8x64xf32>
    %43 = arith.mulf %36, %36 : vector<8x64xf32>
    %c4_i32_19 = arith.constant 4 : i32
    %44 = tpu.dynamic_rotate %43 by %c4_i32_19 dim 0 : vector<8x64xf32>, i32 -> vector<8x64xf32>
    %45 = arith.addf %43, %44 : vector<8x64xf32>
    %c2_i32_20 = arith.constant 2 : i32
    %46 = tpu.dynamic_rotate %45 by %c2_i32_20 dim 0 : vector<8x64xf32>, i32 -> vector<8x64xf32>
    %47 = arith.addf %45, %46 : vector<8x64xf32>
    %c1_i32_21 = arith.constant 1 : i32
    %48 = tpu.dynamic_rotate %47 by %c1_i32_21 dim 0 : vector<8x64xf32>, i32 -> vector<8x64xf32>
    %49 = arith.addf %47, %48 : vector<8x64xf32>
    %cst_22 = arith.constant 1.250000e-01 : f32
    %50 = vector.broadcast %cst_22 : f32 to vector<8x64xf32>
    %51 = arith.mulf %42, %50 : vector<8x64xf32>
    %cst_23 = arith.constant 1.250000e-01 : f32
    %52 = vector.broadcast %cst_23 : f32 to vector<8x64xf32>
    %53 = arith.mulf %49, %52 : vector<8x64xf32>
    %54 = arith.mulf %51, %51 : vector<8x64xf32>
    %55 = arith.subf %53, %54 : vector<8x64xf32>
    %cst_24 = arith.constant 0.000000e+00 : f32
    %56 = vector.broadcast %cst_24 : f32 to vector<8x64xf32>
    %57 = arith.maximumf %55, %56 : vector<8x64xf32>
    %58 = arith.subf %36, %51 : vector<8x64xf32>
    %cst_25 = arith.constant 9.99999974E-6 : f32
    %59 = vector.broadcast %cst_25 : f32 to vector<8x64xf32>
    %60 = arith.addf %57, %59 : vector<8x64xf32>
    %61 = math.rsqrt %60 : vector<8x64xf32>
    %62 = arith.mulf %58, %61 : vector<8x64xf32>
    %c2 = arith.constant 2 : index
    %c0_26 = arith.constant 0 : index
    %c0_27 = arith.constant 0 : index
    %63 = vector.load %arg1[%c2, %c0_26, %c0_27] : memref<8x64x64xf32, #tpu.memory_space<vmem>>, vector<1x64x64xf32>
    %64 = vector.shape_cast %63 : vector<1x64x64xf32> to vector<64x64xf32>
    %cst_28 = arith.constant dense<0.000000e+00> : vector<8x64xf32>
    %65 = tpu.matmul %62, %64, %cst_28 {dimension_numbers = #tpu.dot_dimension_numbers<[1], [0], [0], [1], [0, 0, 1, 1], [], []>} : vector<8x64xf32>, vector<64x64xf32>, vector<8x64xf32> -> vector<8x64xf32>
    %cst_29 = arith.constant 0.000000e+00 : f32
    %66 = vector.broadcast %cst_29 : f32 to vector<8x64xf32>
    %67 = arith.maximumf %65, %66 : vector<8x64xf32>
    %c4_i32_30 = arith.constant 4 : i32
    %68 = tpu.dynamic_rotate %67 by %c4_i32_30 dim 0 : vector<8x64xf32>, i32 -> vector<8x64xf32>
    %69 = arith.addf %67, %68 : vector<8x64xf32>
    %c2_i32_31 = arith.constant 2 : i32
    %70 = tpu.dynamic_rotate %69 by %c2_i32_31 dim 0 : vector<8x64xf32>, i32 -> vector<8x64xf32>
    %71 = arith.addf %69, %70 : vector<8x64xf32>
    %c1_i32_32 = arith.constant 1 : i32
    %72 = tpu.dynamic_rotate %71 by %c1_i32_32 dim 0 : vector<8x64xf32>, i32 -> vector<8x64xf32>
    %73 = arith.addf %71, %72 : vector<8x64xf32>
    %74 = arith.mulf %67, %67 : vector<8x64xf32>
    %c4_i32_33 = arith.constant 4 : i32
    %75 = tpu.dynamic_rotate %74 by %c4_i32_33 dim 0 : vector<8x64xf32>, i32 -> vector<8x64xf32>
    %76 = arith.addf %74, %75 : vector<8x64xf32>
    %c2_i32_34 = arith.constant 2 : i32
    %77 = tpu.dynamic_rotate %76 by %c2_i32_34 dim 0 : vector<8x64xf32>, i32 -> vector<8x64xf32>
    %78 = arith.addf %76, %77 : vector<8x64xf32>
    %c1_i32_35 = arith.constant 1 : i32
    %79 = tpu.dynamic_rotate %78 by %c1_i32_35 dim 0 : vector<8x64xf32>, i32 -> vector<8x64xf32>
    %80 = arith.addf %78, %79 : vector<8x64xf32>
    %cst_36 = arith.constant 1.250000e-01 : f32
    %81 = vector.broadcast %cst_36 : f32 to vector<8x64xf32>
    %82 = arith.mulf %73, %81 : vector<8x64xf32>
    %cst_37 = arith.constant 1.250000e-01 : f32
    %83 = vector.broadcast %cst_37 : f32 to vector<8x64xf32>
    %84 = arith.mulf %80, %83 : vector<8x64xf32>
    %85 = arith.mulf %82, %82 : vector<8x64xf32>
    %86 = arith.subf %84, %85 : vector<8x64xf32>
    %cst_38 = arith.constant 0.000000e+00 : f32
    %87 = vector.broadcast %cst_38 : f32 to vector<8x64xf32>
    %88 = arith.maximumf %86, %87 : vector<8x64xf32>
    %89 = arith.subf %67, %82 : vector<8x64xf32>
    %cst_39 = arith.constant 9.99999974E-6 : f32
    %90 = vector.broadcast %cst_39 : f32 to vector<8x64xf32>
    %91 = arith.addf %88, %90 : vector<8x64xf32>
    %92 = math.rsqrt %91 : vector<8x64xf32>
    %93 = arith.mulf %89, %92 : vector<8x64xf32>
    %c3 = arith.constant 3 : index
    %c0_40 = arith.constant 0 : index
    %c0_41 = arith.constant 0 : index
    %94 = vector.load %arg1[%c3, %c0_40, %c0_41] : memref<8x64x64xf32, #tpu.memory_space<vmem>>, vector<1x64x64xf32>
    %95 = vector.shape_cast %94 : vector<1x64x64xf32> to vector<64x64xf32>
    %cst_42 = arith.constant dense<0.000000e+00> : vector<8x64xf32>
    %96 = tpu.matmul %93, %95, %cst_42 {dimension_numbers = #tpu.dot_dimension_numbers<[1], [0], [0], [1], [0, 0, 1, 1], [], []>} : vector<8x64xf32>, vector<64x64xf32>, vector<8x64xf32> -> vector<8x64xf32>
    %c4 = arith.constant 4 : index
    %c0_43 = arith.constant 0 : index
    %c0_44 = arith.constant 0 : index
    %97 = vector.load %arg1[%c4, %c0_43, %c0_44] : memref<8x64x64xf32, #tpu.memory_space<vmem>>, vector<1x64x64xf32>
    %98 = vector.shape_cast %97 : vector<1x64x64xf32> to vector<64x64xf32>
    %cst_45 = arith.constant dense<0.000000e+00> : vector<8x64xf32>
    %99 = tpu.matmul %96, %98, %cst_45 {dimension_numbers = #tpu.dot_dimension_numbers<[1], [0], [0], [1], [0, 0, 1, 1], [], []>} : vector<8x64xf32>, vector<64x64xf32>, vector<8x64xf32> -> vector<8x64xf32>
    %cst_46 = arith.constant 0.000000e+00 : f32
    %100 = vector.broadcast %cst_46 : f32 to vector<8x64xf32>
    %101 = arith.maximumf %99, %100 : vector<8x64xf32>
    %c4_i32_47 = arith.constant 4 : i32
    %102 = tpu.dynamic_rotate %101 by %c4_i32_47 dim 0 : vector<8x64xf32>, i32 -> vector<8x64xf32>
    %103 = arith.addf %101, %102 : vector<8x64xf32>
    %c2_i32_48 = arith.constant 2 : i32
    %104 = tpu.dynamic_rotate %103 by %c2_i32_48 dim 0 : vector<8x64xf32>, i32 -> vector<8x64xf32>
    %105 = arith.addf %103, %104 : vector<8x64xf32>
    %c1_i32_49 = arith.constant 1 : i32
    %106 = tpu.dynamic_rotate %105 by %c1_i32_49 dim 0 : vector<8x64xf32>, i32 -> vector<8x64xf32>
    %107 = arith.addf %105, %106 : vector<8x64xf32>
    %108 = arith.mulf %101, %101 : vector<8x64xf32>
    %c4_i32_50 = arith.constant 4 : i32
    %109 = tpu.dynamic_rotate %108 by %c4_i32_50 dim 0 : vector<8x64xf32>, i32 -> vector<8x64xf32>
    %110 = arith.addf %108, %109 : vector<8x64xf32>
    %c2_i32_51 = arith.constant 2 : i32
    %111 = tpu.dynamic_rotate %110 by %c2_i32_51 dim 0 : vector<8x64xf32>, i32 -> vector<8x64xf32>
    %112 = arith.addf %110, %111 : vector<8x64xf32>
    %c1_i32_52 = arith.constant 1 : i32
    %113 = tpu.dynamic_rotate %112 by %c1_i32_52 dim 0 : vector<8x64xf32>, i32 -> vector<8x64xf32>
    %114 = arith.addf %112, %113 : vector<8x64xf32>
    %cst_53 = arith.constant 1.250000e-01 : f32
    %115 = vector.broadcast %cst_53 : f32 to vector<8x64xf32>
    %116 = arith.mulf %107, %115 : vector<8x64xf32>
    %cst_54 = arith.constant 1.250000e-01 : f32
    %117 = vector.broadcast %cst_54 : f32 to vector<8x64xf32>
    %118 = arith.mulf %114, %117 : vector<8x64xf32>
    %119 = arith.mulf %116, %116 : vector<8x64xf32>
    %120 = arith.subf %118, %119 : vector<8x64xf32>
    %cst_55 = arith.constant 0.000000e+00 : f32
    %121 = vector.broadcast %cst_55 : f32 to vector<8x64xf32>
    %122 = arith.maximumf %120, %121 : vector<8x64xf32>
    %123 = arith.subf %101, %116 : vector<8x64xf32>
    %cst_56 = arith.constant 9.99999974E-6 : f32
    %124 = vector.broadcast %cst_56 : f32 to vector<8x64xf32>
    %125 = arith.addf %122, %124 : vector<8x64xf32>
    %126 = math.rsqrt %125 : vector<8x64xf32>
    %127 = arith.mulf %123, %126 : vector<8x64xf32>
    %c5 = arith.constant 5 : index
    %c0_57 = arith.constant 0 : index
    %c0_58 = arith.constant 0 : index
    %128 = vector.load %arg1[%c5, %c0_57, %c0_58] : memref<8x64x64xf32, #tpu.memory_space<vmem>>, vector<1x64x64xf32>
    %129 = vector.shape_cast %128 : vector<1x64x64xf32> to vector<64x64xf32>
    %cst_59 = arith.constant dense<0.000000e+00> : vector<8x64xf32>
    %130 = tpu.matmul %127, %129, %cst_59 {dimension_numbers = #tpu.dot_dimension_numbers<[1], [0], [0], [1], [0, 0, 1, 1], [], []>} : vector<8x64xf32>, vector<64x64xf32>, vector<8x64xf32> -> vector<8x64xf32>
    %cst_60 = arith.constant 0.000000e+00 : f32
    %131 = vector.broadcast %cst_60 : f32 to vector<8x64xf32>
    %132 = arith.maximumf %130, %131 : vector<8x64xf32>
    %c4_i32_61 = arith.constant 4 : i32
    %133 = tpu.dynamic_rotate %132 by %c4_i32_61 dim 0 : vector<8x64xf32>, i32 -> vector<8x64xf32>
    %134 = arith.addf %132, %133 : vector<8x64xf32>
    %c2_i32_62 = arith.constant 2 : i32
    %135 = tpu.dynamic_rotate %134 by %c2_i32_62 dim 0 : vector<8x64xf32>, i32 -> vector<8x64xf32>
    %136 = arith.addf %134, %135 : vector<8x64xf32>
    %c1_i32_63 = arith.constant 1 : i32
    %137 = tpu.dynamic_rotate %136 by %c1_i32_63 dim 0 : vector<8x64xf32>, i32 -> vector<8x64xf32>
    %138 = arith.addf %136, %137 : vector<8x64xf32>
    %139 = arith.mulf %132, %132 : vector<8x64xf32>
    %c4_i32_64 = arith.constant 4 : i32
    %140 = tpu.dynamic_rotate %139 by %c4_i32_64 dim 0 : vector<8x64xf32>, i32 -> vector<8x64xf32>
    %141 = arith.addf %139, %140 : vector<8x64xf32>
    %c2_i32_65 = arith.constant 2 : i32
    %142 = tpu.dynamic_rotate %141 by %c2_i32_65 dim 0 : vector<8x64xf32>, i32 -> vector<8x64xf32>
    %143 = arith.addf %141, %142 : vector<8x64xf32>
    %c1_i32_66 = arith.constant 1 : i32
    %144 = tpu.dynamic_rotate %143 by %c1_i32_66 dim 0 : vector<8x64xf32>, i32 -> vector<8x64xf32>
    %145 = arith.addf %143, %144 : vector<8x64xf32>
    %cst_67 = arith.constant 1.250000e-01 : f32
    %146 = vector.broadcast %cst_67 : f32 to vector<8x64xf32>
    %147 = arith.mulf %138, %146 : vector<8x64xf32>
    %cst_68 = arith.constant 1.250000e-01 : f32
    %148 = vector.broadcast %cst_68 : f32 to vector<8x64xf32>
    %149 = arith.mulf %145, %148 : vector<8x64xf32>
    %150 = arith.mulf %147, %147 : vector<8x64xf32>
    %151 = arith.subf %149, %150 : vector<8x64xf32>
    %cst_69 = arith.constant 0.000000e+00 : f32
    %152 = vector.broadcast %cst_69 : f32 to vector<8x64xf32>
    %153 = arith.maximumf %151, %152 : vector<8x64xf32>
    %154 = arith.subf %132, %147 : vector<8x64xf32>
    %cst_70 = arith.constant 9.99999974E-6 : f32
    %155 = vector.broadcast %cst_70 : f32 to vector<8x64xf32>
    %156 = arith.addf %153, %155 : vector<8x64xf32>
    %157 = math.rsqrt %156 : vector<8x64xf32>
    %158 = arith.mulf %154, %157 : vector<8x64xf32>
    %c6 = arith.constant 6 : index
    %c0_71 = arith.constant 0 : index
    %c0_72 = arith.constant 0 : index
    %159 = vector.load %arg1[%c6, %c0_71, %c0_72] : memref<8x64x64xf32, #tpu.memory_space<vmem>>, vector<1x64x64xf32>
    %160 = vector.shape_cast %159 : vector<1x64x64xf32> to vector<64x64xf32>
    %cst_73 = arith.constant dense<0.000000e+00> : vector<8x64xf32>
    %161 = tpu.matmul %158, %160, %cst_73 {dimension_numbers = #tpu.dot_dimension_numbers<[1], [0], [0], [1], [0, 0, 1, 1], [], []>} : vector<8x64xf32>, vector<64x64xf32>, vector<8x64xf32> -> vector<8x64xf32>
    %cst_74 = arith.constant 0.000000e+00 : f32
    %162 = vector.broadcast %cst_74 : f32 to vector<8x64xf32>
    %163 = arith.maximumf %161, %162 : vector<8x64xf32>
    %c4_i32_75 = arith.constant 4 : i32
    %164 = tpu.dynamic_rotate %163 by %c4_i32_75 dim 0 : vector<8x64xf32>, i32 -> vector<8x64xf32>
    %165 = arith.addf %163, %164 : vector<8x64xf32>
    %c2_i32_76 = arith.constant 2 : i32
    %166 = tpu.dynamic_rotate %165 by %c2_i32_76 dim 0 : vector<8x64xf32>, i32 -> vector<8x64xf32>
    %167 = arith.addf %165, %166 : vector<8x64xf32>
    %c1_i32_77 = arith.constant 1 : i32
    %168 = tpu.dynamic_rotate %167 by %c1_i32_77 dim 0 : vector<8x64xf32>, i32 -> vector<8x64xf32>
    %169 = arith.addf %167, %168 : vector<8x64xf32>
    %170 = arith.mulf %163, %163 : vector<8x64xf32>
    %c4_i32_78 = arith.constant 4 : i32
    %171 = tpu.dynamic_rotate %170 by %c4_i32_78 dim 0 : vector<8x64xf32>, i32 -> vector<8x64xf32>
    %172 = arith.addf %170, %171 : vector<8x64xf32>
    %c2_i32_79 = arith.constant 2 : i32
    %173 = tpu.dynamic_rotate %172 by %c2_i32_79 dim 0 : vector<8x64xf32>, i32 -> vector<8x64xf32>
    %174 = arith.addf %172, %173 : vector<8x64xf32>
    %c1_i32_80 = arith.constant 1 : i32
    %175 = tpu.dynamic_rotate %174 by %c1_i32_80 dim 0 : vector<8x64xf32>, i32 -> vector<8x64xf32>
    %176 = arith.addf %174, %175 : vector<8x64xf32>
    %cst_81 = arith.constant 1.250000e-01 : f32
    %177 = vector.broadcast %cst_81 : f32 to vector<8x64xf32>
    %178 = arith.mulf %169, %177 : vector<8x64xf32>
    %cst_82 = arith.constant 1.250000e-01 : f32
    %179 = vector.broadcast %cst_82 : f32 to vector<8x64xf32>
    %180 = arith.mulf %176, %179 : vector<8x64xf32>
    %181 = arith.mulf %178, %178 : vector<8x64xf32>
    %182 = arith.subf %180, %181 : vector<8x64xf32>
    %cst_83 = arith.constant 0.000000e+00 : f32
    %183 = vector.broadcast %cst_83 : f32 to vector<8x64xf32>
    %184 = arith.maximumf %182, %183 : vector<8x64xf32>
    %185 = arith.subf %163, %178 : vector<8x64xf32>
    %cst_84 = arith.constant 9.99999974E-6 : f32
    %186 = vector.broadcast %cst_84 : f32 to vector<8x64xf32>
    %187 = arith.addf %184, %186 : vector<8x64xf32>
    %188 = math.rsqrt %187 : vector<8x64xf32>
    %189 = arith.mulf %185, %188 : vector<8x64xf32>
    %c7 = arith.constant 7 : index
    %c0_85 = arith.constant 0 : index
    %c0_86 = arith.constant 0 : index
    %190 = vector.load %arg1[%c7, %c0_85, %c0_86] : memref<8x64x64xf32, #tpu.memory_space<vmem>>, vector<1x64x64xf32>
    %191 = vector.shape_cast %190 : vector<1x64x64xf32> to vector<64x64xf32>
    %cst_87 = arith.constant dense<0.000000e+00> : vector<8x64xf32>
    %192 = tpu.matmul %189, %191, %cst_87 {dimension_numbers = #tpu.dot_dimension_numbers<[1], [0], [0], [1], [0, 0, 1, 1], [], []>} : vector<8x64xf32>, vector<64x64xf32>, vector<8x64xf32> -> vector<8x64xf32>
    %193 = tpu.concatenate %96, %192 in 1 : vector<8x64xf32>, vector<8x64xf32> -> vector<8x128xf32>
    %c0_88 = arith.constant 0 : index
    %c0_89 = arith.constant 0 : index
    %194 = vector.load %arg2[%c0_88, %c0_89] : memref<8x128xf32, #tpu.memory_space<vmem>>, vector<8x128xf32>
    tpu.vector_store %arg2[%c0_88, %c0_89], %193 {strides = array<i32>} : memref<8x128xf32, #tpu.memory_space<vmem>>, vector<8x128xf32>,
    return
  }
}

</mosaic_0001>

<llo_original>
// kernel: tpu_custom_call.1
$region0: #{tpu_custom_call.1}
  #allocation0 [shape = 'u32[]', space=smem, size = 0x4, offset = 0x4, fixed_abs, tag = 'smem constant byte address 0x4 - core index']
  #allocation1 [shape = 'u32[144,128]{1,0:T(1,128)}', space=vmem, size = 0x12000, scoped, tag = 'internal scratch']
  %s0 = inlined_call_operand.hbm [shape: f32[8,64], index: 0, kind: input, shape index: {}]
  %s1 = inlined_call_operand.hbm [shape: f32[8,64,64], index: 1, kind: input, shape index: {}]
  %s2 = inlined_call_operand.hbm [shape: f32[8,128], index: 2, kind: output, shape index: {}]
  %s3 = sld [smem:[#allocation0]]
  $region26: #{tpu_custom_call.1} parent=0
    _
  %s5 = ssub.s32 1, %s3
  %s6 = scalar_select 0, %s5, %s3
  $region1: #{tpu_custom_call.1} parent=0
    #allocation2 [shape = 'u8[4096]{0}', space=vmem, size = 0x1000, scoped, tag = 'input window, operand 0, single buffered']
    #allocation3 [shape = 's32[1]{0}', space=sflag, size = 0x4, scoped, tag = 'scoped memory for tpu_custom_call.1']
    #allocation4 [shape = 's32[1]{0}', space=sflag, size = 0x4, scoped, tag = 'scoped memory for tpu_custom_call.1']
    #allocation5 [shape = 'u8[262144]{0}', space=vmem, size = 0x40000, scoped, tag = 'input window, operand 1, single buffered']
    #allocation6 [shape = 's32[1]{0}', space=sflag, size = 0x4, scoped, tag = 'scoped memory for tpu_custom_call.1']
    #allocation7 [shape = 'u8[4096]{0}', space=vmem, size = 0x1000, scoped, tag = 'output window, operand 0, single buffered']
    %7 = vsyncpa [#allocation3], 0
    %8 = vsyncpa [#allocation6], 0
    %9 = vsyncpa [#allocation4], 0
    // Predicated region
    $region2: #{tpu_custom_call.1} parent=1 // pred_check
      _
    $region3: #{tpu_custom_call.1} parent=1 // pred_check_branch
      %11 = sbr.rel (0) target = $region5
    $region4: #{tpu_custom_call.1} parent=1 // pred_region
      %s13 = ssub.s32 128, 128
      %14 = vsyncadd [#allocation3], %s13
      %s16 = sshll.u32 [#allocation2], 4
      %s17 = int_to_ptr.vmem [resolvable:$true] %s16
      %19 = dma.hbm_to_vmem [thread:$0]  %s0, 128, %s17, [#allocation3]
    $region5: #{tpu_custom_call.1} parent=1 // pred_fallthru
      _
    // Predicated region
    $region6: #{tpu_custom_call.1} parent=1 // pred_check
      _
    $region7: #{tpu_custom_call.1} parent=1 // pred_check_branch
      %21 = sbr.rel (0) target = $region9
    $region8: #{tpu_custom_call.1} parent=1 // pred_region
      %s23 = ssub.s32 8192, 8192
      %24 = vsyncadd [#allocation6], %s23
      %s25 = sshll.u32 [#allocation5], 4
      %s26 = int_to_ptr.vmem [resolvable:$true] %s25
      %31 = dma.hbm_to_vmem [thread:$0]  %s1, 8192, %s26, [#allocation6], 128, 128, 8
    $region9: #{tpu_custom_call.1} parent=1 // pred_fallthru
      _
    // Predicated region
    $region10: #{tpu_custom_call.1} parent=1 // pred_check
      _
    $region11: #{tpu_custom_call.1} parent=1 // pred_check_branch
      %33 = sbr.rel (0) target = $region13
    $region12: #{tpu_custom_call.1} parent=1 // pred_region
      %34 = dma.done [#allocation3], 128
    $region13: #{tpu_custom_call.1} parent=1 // pred_fallthru
      _
    // Predicated region
    $region14: #{tpu_custom_call.1} parent=1 // pred_check
      _
    $region15: #{tpu_custom_call.1} parent=1 // pred_check_branch
      %36 = sbr.rel (0) target = $region17
    $region16: #{tpu_custom_call.1} parent=1 // pred_region
      %37 = dma.done [#allocation6], 8192
    $region17: #{tpu_custom_call.1} parent=1 // pred_fallthru
      _
    %v38 = vld [vmem:[#allocation2] sm:$0xff]
    %v39 = vld [vmem:[#allocation5] sm:$0xff]
    %v40 = vld [vmem:[#allocation5 + $0x8] sm:$0xff]
    %v41 = vld [vmem:[#allocation5 + $0x10] sm:$0xff]
    %v42 = vld [vmem:[#allocation5 + $0x18] sm:$0xff]
    %v43 = vld [vmem:[#allocation5 + $0x20] sm:$0xff]
    %v44 = vld [vmem:[#allocation5 + $0x28] sm:$0xff]
    %v45 = vld [vmem:[#allocation5 + $0x30] sm:$0xff]
    %v46 = vld [vmem:[#allocation5 + $0x38] sm:$0xff]
    %vm47 = vcmask 523264
    %v49 = vsel %vm47, %v38, 0
    %51 = vmatprep.subr.mxu0 0.0
    %52 = vmatpush1.msra.mxu0 %v39
    %53 = vmatprep.subr.mxu0 0.0
    %54 = vmatpush1.msra.mxu0 %v40
    %55 = vmatprep.subr.mxu0 0.0
    %56 = vmatpush1.msra.mxu0 %v41
    %57 = vmatprep.subr.mxu0 0.0
    %58 = vmatpush1.msra.mxu0 %v42
    %59 = vmatprep.subr.mxu0 0.0
    %60 = vmatpush1.msra.mxu0 %v43
    %61 = vmatprep.subr.mxu0 0.0
    %62 = vmatpush1.msra.mxu0 %v44
    %63 = vmatprep.subr.mxu0 0.0
    %64 = vmatpush1.msra.mxu0 %v45
    %65 = vmatprep.subr.mxu0 0.0
    %66 = vmatpush1.msra.mxu0 %v46
    %67 = vmatprep.subr.mxu0 0.0
    %68 = vmatpush1.msra.mxu0 0.0
    %69 = vmatprep.subr.mxu0 0.0
    %70 = vmatpush1.msra.mxu0 0.0
    %71 = vmatprep.subr.mxu0 0.0
    %72 = vmatpush1.msra.mxu0 0.0
    %73 = vmatprep.subr.mxu0 0.0
    %74 = vmatpush1.msra.mxu0 0.0
    %75 = vmatprep.subr.mxu0 0.0
    %76 = vmatpush1.msra.mxu0 0.0
    %77 = vmatprep.subr.mxu0 0.0
    %78 = vmatpush1.msra.mxu0 0.0
    %79 = vmatprep.subr.mxu0 0.0
    %80 = vmatpush1.msra.mxu0 0.0
    %81 = vmatprep.subr.mxu0 0.0
    %82 = vmatpush1.msra.mxu0 0.0
    %83 = vmatprep.subr.mxu0 0.0
    %84 = vmatpush1.msra.mxu0 0.0
    %85 = vmatprep.subr.mxu0 0.0
    %86 = vmatpush1.msra.mxu0 0.0
    %87 = vmatprep.subr.mxu0 0.0
    %88 = vmatpush1.msra.mxu0 0.0
    %89 = vmatprep.subr.mxu0 0.0
    %90 = vmatpush1.msra.mxu0 0.0
    %91 = vmatprep.subr.mxu0 0.0
    %92 = vmatpush1.msra.mxu0 0.0
    %93 = vmatprep.subr.mxu0 0.0
    %94 = vmatpush1.msra.mxu0 0.0
    %95 = vmatprep.subr.mxu0 0.0
    %96 = vmatpush1.msra.mxu0 0.0
    %97 = vmatprep.subr.mxu0 0.0
    %98 = vmatpush1.msra.mxu0 0.0
    %99 = vmatprep.subr.mxu0 0.0
    %100 = vmatpush1.msra.mxu0 0.0
    %101 = vmatprep.subr.mxu0 0.0
    %102 = vmatpush1.msra.mxu0 0.0
    %103 = vmatprep.subr.mxu0 0.0
    %104 = vmatpush1.msra.mxu0 0.0
    %105 = vmatprep.subr.mxu0 0.0
    %106 = vmatpush1.msra.mxu0 0.0
    %107 = vmatprep.subr.mxu0 0.0
    %108 = vmatpush1.msra.mxu0 0.0
    %109 = vmatprep.subr.mxu0 0.0
    %110 = vmatpush1.msra.mxu0 0.0
    %111 = vmatprep.subr.mxu0 0.0
    %112 = vmatpush1.msra.mxu0 0.0
    %113 = vmatprep.subr.mxu0 0.0
    %114 = vmatpush1.msra.mxu0 0.0
    %115 = vmatprep.mubr.f32.mxu0 0.0
    %116 = vmatmul.mubr.f32.gmra.mrb[0].mxu0 %v49
    %v117 = vpop.f32.mrb[0].mxu0
    %v118 = vadd.f32 0.0, %v117
    %v119 = vpop.f32.mrb[0].mxu0
    %120 = vdwg.mxu0
    %v121 = vmax.f32 %v118, 0.0
    %v122 = vrot.slane %v121, 4
    %v123 = vadd.f32 %v121, %v122
    %v124 = vrot.slane %v123, 6
    %v125 = vadd.f32 %v123, %v124
    %v126 = vrot.slane %v125, 7
    %v127 = vadd.f32 %v125, %v126
    %v128 = vmul.f32 %v121, %v121
    %v129 = vrot.slane %v128, 4
    %v130 = vadd.f32 %v128, %v129
    %v131 = vrot.slane %v130, 6
    %v132 = vadd.f32 %v130, %v131
    %v133 = vrot.slane %v132, 7
    %v134 = vadd.f32 %v132, %v133
    %v135 = vmul.f32 %v127, 0.125
    %v136 = vmul.f32 %v134, 0.125
    %v137 = vmul.f32 %v135, %v135
    %v138 = vsub.f32 %v136, %v137
    %v139 = vmax.f32 %v138, 0.0
    %v140 = vsub.f32 %v121, %v135
    %v141 = vadd.f32 %v139, 1e-05
    %v142 = vrsqrt.pop %v141
    %v143 = vmul.f32 %v140, %v142
    %s144 = scalar_lea.vmem [#allocation5], 64
    %v145 = vld [vmem:[%s144] sm:$0xff]
    %v146 = vld [vmem:[%s144 + $0x8] sm:$0xff]
    %v147 = vld [vmem:[%s144 + $0x10] sm:$0xff]
    %v148 = vld [vmem:[%s144 + $0x18] sm:$0xff]
    %v149 = vld [vmem:[%s144 + $0x20] sm:$0xff]
    %v150 = vld [vmem:[%s144 + $0x28] sm:$0xff]
    %v151 = vld [vmem:[%s144 + $0x30] sm:$0xff]
    %v152 = vld [vmem:[%s144 + $0x38] sm:$0xff]
    %v154 = vsel %vm47, %v143, 0
    %156 = vmatprep.subr.mxu0 0.0
    %157 = vmatpush1.msra.mxu0 %v145
    %158 = vmatprep.subr.mxu0 0.0
    %159 = vmatpush1.msra.mxu0 %v146
    %160 = vmatprep.subr.mxu0 0.0
    %161 = vmatpush1.msra.mxu0 %v147
    %162 = vmatprep.subr.mxu0 0.0
    %163 = vmatpush1.msra.mxu0 %v148
    %164 = vmatprep.subr.mxu0 0.0
    %165 = vmatpush1.msra.mxu0 %v149
    %166 = vmatprep.subr.mxu0 0.0
    %167 = vmatpush1.msra.mxu0 %v150
    %168 = vmatprep.subr.mxu0 0.0
    %169 = vmatpush1.msra.mxu0 %v151
    %170 = vmatprep.subr.mxu0 0.0
    %171 = vmatpush1.msra.mxu0 %v152
    %172 = vmatprep.subr.mxu0 0.0
    %173 = vmatpush1.msra.mxu0 0.0
    %174 = vmatprep.subr.mxu0 0.0
    %175 = vmatpush1.msra.mxu0 0.0
    %176 = vmatprep.subr.mxu0 0.0
    %177 = vmatpush1.msra.mxu0 0.0
    %178 = vmatprep.subr.mxu0 0.0
    %179 = vmatpush1.msra.mxu0 0.0
    %180 = vmatprep.subr.mxu0 0.0
    %181 = vmatpush1.msra.mxu0 0.0
    %182 = vmatprep.subr.mxu0 0.0
    %183 = vmatpush1.msra.mxu0 0.0
    %184 = vmatprep.subr.mxu0 0.0
    %185 = vmatpush1.msra.mxu0 0.0
    %186 = vmatprep.subr.mxu0 0.0
    %187 = vmatpush1.msra.mxu0 0.0
    %188 = vmatprep.subr.mxu0 0.0
    %189 = vmatpush1.msra.mxu0 0.0
    %190 = vmatprep.subr.mxu0 0.0
    %191 = vmatpush1.msra.mxu0 0.0
    %192 = vmatprep.subr.mxu0 0.0
    %193 = vmatpush1.msra.mxu0 0.0
    %194 = vmatprep.subr.mxu0 0.0
    %195 = vmatpush1.msra.mxu0 0.0
    %196 = vmatprep.subr.mxu0 0.0
    %197 = vmatpush1.msra.mxu0 0.0
    %198 = vmatprep.subr.mxu0 0.0
    %199 = vmatpush1.msra.mxu0 0.0
    %200 = vmatprep.subr.mxu0 0.0
    %201 = vmatpush1.msra.mxu0 0.0
    %202 = vmatprep.subr.mxu0 0.0
    %203 = vmatpush1.msra.mxu0 0.0
    %204 = vmatprep.subr.mxu0 0.0
    %205 = vmatpush1.msra.mxu0 0.0
    %206 = vmatprep.subr.mxu0 0.0
    %207 = vmatpush1.msra.mxu0 0.0
    %208 = vmatprep.subr.mxu0 0.0
    %209 = vmatpush1.msra.mxu0 0.0
    %210 = vmatprep.subr.mxu0 0.0
    %211 = vmatpush1.msra.mxu0 0.0
    %212 = vmatprep.subr.mxu0 0.0
    %213 = vmatpush1.msra.mxu0 0.0
    %214 = vmatprep.subr.mxu0 0.0
    %215 = vmatpush1.msra.mxu0 0.0
    %216 = vmatprep.subr.mxu0 0.0
    %217 = vmatpush1.msra.mxu0 0.0
    %218 = vmatprep.subr.mxu0 0.0
    %219 = vmatpush1.msra.mxu0 0.0
    %220 = vmatprep.mubr.f32.mxu0 0.0
    %221 = vmatmul.mubr.f32.gmra.mrb[0].mxu0 %v154
    %v222 = vpop.f32.mrb[0].mxu0
    %v223 = vadd.f32 0.0, %v222
    %v224 = vpop.f32.mrb[0].mxu0
    %225 = vdwg.mxu0
    %v226 = vmax.f32 %v223, 0.0
    %v227 = vrot.slane %v226, 4
    %v228 = vadd.f32 %v226, %v227
    %v229 = vrot.slane %v228, 6
    %v230 = vadd.f32 %v228, %v229
    %v231 = vrot.slane %v230, 7
    %v232 = vadd.f32 %v230, %v231
    %v233 = vmul.f32 %v226, %v226
    %v234 = vrot.slane %v233, 4
    %v235 = vadd.f32 %v233, %v234
    %v236 = vrot.slane %v235, 6
    %v237 = vadd.f32 %v235, %v236
    %v238 = vrot.slane %v237, 7
    %v239 = vadd.f32 %v237, %v238
    %v240 = vmul.f32 %v232, 0.125
    %v241 = vmul.f32 %v239, 0.125
    %v242 = vmul.f32 %v240, %v240
    %v243 = vsub.f32 %v241, %v242
    %v244 = vmax.f32 %v243, 0.0
    %v245 = vsub.f32 %v226, %v240
    %v246 = vadd.f32 %v244, 1e-05
    %v247 = vrsqrt.pop %v246
    %v248 = vmul.f32 %v245, %v247
    %s249 = scalar_lea.vmem [#allocation5], 128
    %v250 = vld [vmem:[%s249] sm:$0xff]
    %v251 = vld [vmem:[%s249 + $0x8] sm:$0xff]
    %v252 = vld [vmem:[%s249 + $0x10] sm:$0xff]
    %v253 = vld [vmem:[%s249 + $0x18] sm:$0xff]
    %v254 = vld [vmem:[%s249 + $0x20] sm:$0xff]
    %v255 = vld [vmem:[%s249 + $0x28] sm:$0xff]
    %v256 = vld [vmem:[%s249 + $0x30] sm:$0xff]
    %v257 = vld [vmem:[%s249 + $0x38] sm:$0xff]
    %v259 = vsel %vm47, %v248, 0
    %261 = vmatprep.subr.mxu0 0.0
    %262 = vmatpush1.msra.mxu0 %v250
    %263 = vmatprep.subr.mxu0 0.0
    %264 = vmatpush1.msra.mxu0 %v251
    %265 = vmatprep.subr.mxu0 0.0
    %266 = vmatpush1.msra.mxu0 %v252
    %267 = vmatprep.subr.mxu0 0.0
    %268 = vmatpush1.msra.mxu0 %v253
    %269 = vmatprep.subr.mxu0 0.0
    %270 = vmatpush1.msra.mxu0 %v254
    %271 = vmatprep.subr.mxu0 0.0
    %272 = vmatpush1.msra.mxu0 %v255
    %273 = vmatprep.subr.mxu0 0.0
    %274 = vmatpush1.msra.mxu0 %v256
    %275 = vmatprep.subr.mxu0 0.0
    %276 = vmatpush1.msra.mxu0 %v257
    %277 = vmatprep.subr.mxu0 0.0
    %278 = vmatpush1.msra.mxu0 0.0
    %279 = vmatprep.subr.mxu0 0.0
    %280 = vmatpush1.msra.mxu0 0.0
    %281 = vmatprep.subr.mxu0 0.0
    %282 = vmatpush1.msra.mxu0 0.0
    %283 = vmatprep.subr.mxu0 0.0
    %284 = vmatpush1.msra.mxu0 0.0
    %285 = vmatprep.subr.mxu0 0.0
    %286 = vmatpush1.msra.mxu0 0.0
    %287 = vmatprep.subr.mxu0 0.0
    %288 = vmatpush1.msra.mxu0 0.0
    %289 = vmatprep.subr.mxu0 0.0
    %290 = vmatpush1.msra.mxu0 0.0
    %291 = vmatprep.subr.mxu0 0.0
    %292 = vmatpush1.msra.mxu0 0.0
    %293 = vmatprep.subr.mxu0 0.0
    %294 = vmatpush1.msra.mxu0 0.0
    %295 = vmatprep.subr.mxu0 0.0
    %296 = vmatpush1.msra.mxu0 0.0
    %297 = vmatprep.subr.mxu0 0.0
    %298 = vmatpush1.msra.mxu0 0.0
    %299 = vmatprep.subr.mxu0 0.0
    %300 = vmatpush1.msra.mxu0 0.0
    %301 = vmatprep.subr.mxu0 0.0
    %302 = vmatpush1.msra.mxu0 0.0
    %303 = vmatprep.subr.mxu0 0.0
    %304 = vmatpush1.msra.mxu0 0.0
    %305 = vmatprep.subr.mxu0 0.0
    %306 = vmatpush1.msra.mxu0 0.0
    %307 = vmatprep.subr.mxu0 0.0
    %308 = vmatpush1.msra.mxu0 0.0
    %309 = vmatprep.subr.mxu0 0.0
    %310 = vmatpush1.msra.mxu0 0.0
    %311 = vmatprep.subr.mxu0 0.0
    %312 = vmatpush1.msra.mxu0 0.0
    %313 = vmatprep.subr.mxu0 0.0
    %314 = vmatpush1.msra.mxu0 0.0
    %315 = vmatprep.subr.mxu0 0.0
    %316 = vmatpush1.msra.mxu0 0.0
    %317 = vmatprep.subr.mxu0 0.0
    %318 = vmatpush1.msra.mxu0 0.0
    %319 = vmatprep.subr.mxu0 0.0
    %320 = vmatpush1.msra.mxu0 0.0
    %321 = vmatprep.subr.mxu0 0.0
    %322 = vmatpush1.msra.mxu0 0.0
    %323 = vmatprep.subr.mxu0 0.0
    %324 = vmatpush1.msra.mxu0 0.0
    %325 = vmatprep.mubr.f32.mxu0 0.0
    %326 = vmatmul.mubr.f32.gmra.mrb[0].mxu0 %v259
    %v327 = vpop.f32.mrb[0].mxu0
    %v328 = vadd.f32 0.0, %v327
    %v329 = vpop.f32.mrb[0].mxu0
    %330 = vdwg.mxu0
    %v331 = vmax.f32 %v328, 0.0
    %v332 = vrot.slane %v331, 4
    %v333 = vadd.f32 %v331, %v332
    %v334 = vrot.slane %v333, 6
    %v335 = vadd.f32 %v333, %v334
    %v336 = vrot.slane %v335, 7
    %v337 = vadd.f32 %v335, %v336
    %v338 = vmul.f32 %v331, %v331
    %v339 = vrot.slane %v338, 4
    %v340 = vadd.f32 %v338, %v339
    %v341 = vrot.slane %v340, 6
    %v342 = vadd.f32 %v340, %v341
    %v343 = vrot.slane %v342, 7
    %v344 = vadd.f32 %v342, %v343
    %v345 = vmul.f32 %v337, 0.125
    %v346 = vmul.f32 %v344, 0.125
    %v347 = vmul.f32 %v345, %v345
    %v348 = vsub.f32 %v346, %v347
    %v349 = vmax.f32 %v348, 0.0
    %v350 = vsub.f32 %v331, %v345
    %v351 = vadd.f32 %v349, 1e-05
    %v352 = vrsqrt.pop %v351
    %v353 = vmul.f32 %v350, %v352
    %s354 = scalar_lea.vmem [#allocation5], 192
    %v355 = vld [vmem:[%s354] sm:$0xff]
    %v356 = vld [vmem:[%s354 + $0x8] sm:$0xff]
    %v357 = vld [vmem:[%s354 + $0x10] sm:$0xff]
    %v358 = vld [vmem:[%s354 + $0x18] sm:$0xff]
    %v359 = vld [vmem:[%s354 + $0x20] sm:$0xff]
    %v360 = vld [vmem:[%s354 + $0x28] sm:$0xff]
    %v361 = vld [vmem:[%s354 + $0x30] sm:$0xff]
    %v362 = vld [vmem:[%s354 + $0x38] sm:$0xff]
    %v364 = vsel %vm47, %v353, 0
    %366 = vmatprep.subr.mxu0 0.0
    %367 = vmatpush1.msra.mxu0 %v355
    %368 = vmatprep.subr.mxu0 0.0
    %369 = vmatpush1.msra.mxu0 %v356
    %370 = vmatprep.subr.mxu0 0.0
    %371 = vmatpush1.msra.mxu0 %v357
    %372 = vmatprep.subr.mxu0 0.0
    %373 = vmatpush1.msra.mxu0 %v358
    %374 = vmatprep.subr.mxu0 0.0
    %375 = vmatpush1.msra.mxu0 %v359
    %376 = vmatprep.subr.mxu0 0.0
    %377 = vmatpush1.msra.mxu0 %v360
    %378 = vmatprep.subr.mxu0 0.0
    %379 = vmatpush1.msra.mxu0 %v361
    %380 = vmatprep.subr.mxu0 0.0
    %381 = vmatpush1.msra.mxu0 %v362
    %382 = vmatprep.subr.mxu0 0.0
    %383 = vmatpush1.msra.mxu0 0.0
    %384 = vmatprep.subr.mxu0 0.0
    %385 = vmatpush1.msra.mxu0 0.0
    %386 = vmatprep.subr.mxu0 0.0
    %387 = vmatpush1.msra.mxu0 0.0
    %388 = vmatprep.subr.mxu0 0.0
    %389 = vmatpush1.msra.mxu0 0.0
    %390 = vmatprep.subr.mxu0 0.0
    %391 = vmatpush1.msra.mxu0 0.0
    %392 = vmatprep.subr.mxu0 0.0
    %393 = vmatpush1.msra.mxu0 0.0
    %394 = vmatprep.subr.mxu0 0.0
    %395 = vmatpush1.msra.mxu0 0.0
    %396 = vmatprep.subr.mxu0 0.0
    %397 = vmatpush1.msra.mxu0 0.0
    %398 = vmatprep.subr.mxu0 0.0
    %399 = vmatpush1.msra.mxu0 0.0
    %400 = vmatprep.subr.mxu0 0.0
    %401 = vmatpush1.msra.mxu0 0.0
    %402 = vmatprep.subr.mxu0 0.0
    %403 = vmatpush1.msra.mxu0 0.0
    %404 = vmatprep.subr.mxu0 0.0
    %405 = vmatpush1.msra.mxu0 0.0
    %406 = vmatprep.subr.mxu0 0.0
    %407 = vmatpush1.msra.mxu0 0.0
    %408 = vmatprep.subr.mxu0 0.0
    %409 = vmatpush1.msra.mxu0 0.0
    %410 = vmatprep.subr.mxu0 0.0
    %411 = vmatpush1.msra.mxu0 0.0
    %412 = vmatprep.subr.mxu0 0.0
    %413 = vmatpush1.msra.mxu0 0.0
    %414 = vmatprep.subr.mxu0 0.0
    %415 = vmatpush1.msra.mxu0 0.0
    %416 = vmatprep.subr.mxu0 0.0
    %417 = vmatpush1.msra.mxu0 0.0
    %418 = vmatprep.subr.mxu0 0.0
    %419 = vmatpush1.msra.mxu0 0.0
    %420 = vmatprep.subr.mxu0 0.0
    %421 = vmatpush1.msra.mxu0 0.0
    %422 = vmatprep.subr.mxu0 0.0
    %423 = vmatpush1.msra.mxu0 0.0
    %424 = vmatprep.subr.mxu0 0.0
    %425 = vmatpush1.msra.mxu0 0.0
    %426 = vmatprep.subr.mxu0 0.0
    %427 = vmatpush1.msra.mxu0 0.0
    %428 = vmatprep.subr.mxu0 0.0
    %429 = vmatpush1.msra.mxu0 0.0
    %430 = vmatprep.mubr.f32.mxu0 0.0
    %431 = vmatmul.mubr.f32.gmra.mrb[0].mxu0 %v364
    %v432 = vpop.f32.mrb[0].mxu0
    %v433 = vadd.f32 0.0, %v432
    %v434 = vpop.f32.mrb[0].mxu0
    %435 = vdwg.mxu0
    %s436 = scalar_lea.vmem [#allocation5], 256
    %v437 = vld [vmem:[%s436] sm:$0xff]
    %v438 = vld [vmem:[%s436 + $0x8] sm:$0xff]
    %v439 = vld [vmem:[%s436 + $0x10] sm:$0xff]
    %v440 = vld [vmem:[%s436 + $0x18] sm:$0xff]
    %v441 = vld [vmem:[%s436 + $0x20] sm:$0xff]
    %v442 = vld [vmem:[%s436 + $0x28] sm:$0xff]
    %v443 = vld [vmem:[%s436 + $0x30] sm:$0xff]
    %v444 = vld [vmem:[%s436 + $0x38] sm:$0xff]
    %v446 = vsel %vm47, %v433, 0
    %448 = vmatprep.subr.mxu0 0.0
    %449 = vmatpush1.msra.mxu0 %v437
    %450 = vmatprep.subr.mxu0 0.0
    %451 = vmatpush1.msra.mxu0 %v438
    %452 = vmatprep.subr.mxu0 0.0
    %453 = vmatpush1.msra.mxu0 %v439
    %454 = vmatprep.subr.mxu0 0.0
    %455 = vmatpush1.msra.mxu0 %v440
    %456 = vmatprep.subr.mxu0 0.0
    %457 = vmatpush1.msra.mxu0 %v441
    %458 = vmatprep.subr.mxu0 0.0
    %459 = vmatpush1.msra.mxu0 %v442
    %460 = vmatprep.subr.mxu0 0.0
    %461 = vmatpush1.msra.mxu0 %v443
    %462 = vmatprep.subr.mxu0 0.0
    %463 = vmatpush1.msra.mxu0 %v444
    %464 = vmatprep.subr.mxu0 0.0
    %465 = vmatpush1.msra.mxu0 0.0
    %466 = vmatprep.subr.mxu0 0.0
    %467 = vmatpush1.msra.mxu0 0.0
    %468 = vmatprep.subr.mxu0 0.0
    %469 = vmatpush1.msra.mxu0 0.0
    %470 = vmatprep.subr.mxu0 0.0
    %471 = vmatpush1.msra.mxu0 0.0
    %472 = vmatprep.subr.mxu0 0.0
    %473 = vmatpush1.msra.mxu0 0.0
    %474 = vmatprep.subr.mxu0 0.0
    %475 = vmatpush1.msra.mxu0 0.0
    %476 = vmatprep.subr.mxu0 0.0
    %477 = vmatpush1.msra.mxu0 0.0
    %478 = vmatprep.subr.mxu0 0.0
    %479 = vmatpush1.msra.mxu0 0.0
    %480 = vmatprep.subr.mxu0 0.0
    %481 = vmatpush1.msra.mxu0 0.0
    %482 = vmatprep.subr.mxu0 0.0
    %483 = vmatpush1.msra.mxu0 0.0
    %484 = vmatprep.subr.mxu0 0.0
    %485 = vmatpush1.msra.mxu0 0.0
    %486 = vmatprep.subr.mxu0 0.0
    %487 = vmatpush1.msra.mxu0 0.0
    %488 = vmatprep.subr.mxu0 0.0
    %489 = vmatpush1.msra.mxu0 0.0
    %490 = vmatprep.subr.mxu0 0.0
    %491 = vmatpush1.msra.mxu0 0.0
    %492 = vmatprep.subr.mxu0 0.0
    %493 = vmatpush1.msra.mxu0 0.0
    %494 = vmatprep.subr.mxu0 0.0
    %495 = vmatpush1.msra.mxu0 0.0
    %496 = vmatprep.subr.mxu0 0.0
    %497 = vmatpush1.msra.mxu0 0.0
    %498 = vmatprep.subr.mxu0 0.0
    %499 = vmatpush1.msra.mxu0 0.0
    %500 = vmatprep.subr.mxu0 0.0
    %501 = vmatpush1.msra.mxu0 0.0
    %502 = vmatprep.subr.mxu0 0.0
    %503 = vmatpush1.msra.mxu0 0.0
    %504 = vmatprep.subr.mxu0 0.0
    %505 = vmatpush1.msra.mxu0 0.0
    %506 = vmatprep.subr.mxu0 0.0
    %507 = vmatpush1.msra.mxu0 0.0
    %508 = vmatprep.subr.mxu0 0.0
    %509 = vmatpush1.msra.mxu0 0.0
    %510 = vmatprep.subr.mxu0 0.0
    %511 = vmatpush1.msra.mxu0 0.0
    %512 = vmatprep.mubr.f32.mxu0 0.0
    %513 = vmatmul.mubr.f32.gmra.mrb[0].mxu0 %v446
    %v514 = vpop.f32.mrb[0].mxu0
    %v515 = vadd.f32 0.0, %v514
    %v516 = vpop.f32.mrb[0].mxu0
    %517 = vdwg.mxu0
    %v518 = vmax.f32 %v515, 0.0
    %v519 = vrot.slane %v518, 4
    %v520 = vadd.f32 %v518, %v519
    %v521 = vrot.slane %v520, 6
    %v522 = vadd.f32 %v520, %v521
    %v523 = vrot.slane %v522, 7
    %v524 = vadd.f32 %v522, %v523
    %v525 = vmul.f32 %v518, %v518
    %v526 = vrot.slane %v525, 4
    %v527 = vadd.f32 %v525, %v526
    %v528 = vrot.slane %v527, 6
    %v529 = vadd.f32 %v527, %v528
    %v530 = vrot.slane %v529, 7
    %v531 = vadd.f32 %v529, %v530
    %v532 = vmul.f32 %v524, 0.125
    %v533 = vmul.f32 %v531, 0.125
    %v534 = vmul.f32 %v532, %v532
    %v535 = vsub.f32 %v533, %v534
    %v536 = vmax.f32 %v535, 0.0
    %v537 = vsub.f32 %v518, %v532
    %v538 = vadd.f32 %v536, 1e-05
    %v539 = vrsqrt.pop %v538
    %v540 = vmul.f32 %v537, %v539
    %s541 = scalar_lea.vmem [#allocation5], 320
    %v542 = vld [vmem:[%s541] sm:$0xff]
    %v543 = vld [vmem:[%s541 + $0x8] sm:$0xff]
    %v544 = vld [vmem:[%s541 + $0x10] sm:$0xff]
    %v545 = vld [vmem:[%s541 + $0x18] sm:$0xff]
    %v546 = vld [vmem:[%s541 + $0x20] sm:$0xff]
    %v547 = vld [vmem:[%s541 + $0x28] sm:$0xff]
    %v548 = vld [vmem:[%s541 + $0x30] sm:$0xff]
    %v549 = vld [vmem:[%s541 + $0x38] sm:$0xff]
    %v551 = vsel %vm47, %v540, 0
    %553 = vmatprep.subr.mxu0 0.0
    %554 = vmatpush1.msra.mxu0 %v542
    %555 = vmatprep.subr.mxu0 0.0
    %556 = vmatpush1.msra.mxu0 %v543
    %557 = vmatprep.subr.mxu0 0.0
    %558 = vmatpush1.msra.mxu0 %v544
    %559 = vmatprep.subr.mxu0 0.0
    %560 = vmatpush1.msra.mxu0 %v545
    %561 = vmatprep.subr.mxu0 0.0
    %562 = vmatpush1.msra.mxu0 %v546
    %563 = vmatprep.subr.mxu0 0.0
    %564 = vmatpush1.msra.mxu0 %v547
    %565 = vmatprep.subr.mxu0 0.0
    %566 = vmatpush1.msra.mxu0 %v548
    %567 = vmatprep.subr.mxu0 0.0
    %568 = vmatpush1.msra.mxu0 %v549
    %569 = vmatprep.subr.mxu0 0.0
    %570 = vmatpush1.msra.mxu0 0.0
    %571 = vmatprep.subr.mxu0 0.0
    %572 = vmatpush1.msra.mxu0 0.0
    %573 = vmatprep.subr.mxu0 0.0
    %574 = vmatpush1.msra.mxu0 0.0
    %575 = vmatprep.subr.mxu0 0.0
    %576 = vmatpush1.msra.mxu0 0.0
    %577 = vmatprep.subr.mxu0 0.0
    %578 = vmatpush1.msra.mxu0 0.0
    %579 = vmatprep.subr.mxu0 0.0
    %580 = vmatpush1.msra.mxu0 0.0
    %581 = vmatprep.subr.mxu0 0.0
    %582 = vmatpush1.msra.mxu0 0.0
    %583 = vmatprep.subr.mxu0 0.0
    %584 = vmatpush1.msra.mxu0 0.0
    %585 = vmatprep.subr.mxu0 0.0
    %586 = vmatpush1.msra.mxu0 0.0
    %587 = vmatprep.subr.mxu0 0.0
    %588 = vmatpush1.msra.mxu0 0.0
    %589 = vmatprep.subr.mxu0 0.0
    %590 = vmatpush1.msra.mxu0 0.0
    %591 = vmatprep.subr.mxu0 0.0
    %592 = vmatpush1.msra.mxu0 0.0
    %593 = vmatprep.subr.mxu0 0.0
    %594 = vmatpush1.msra.mxu0 0.0
    %595 = vmatprep.subr.mxu0 0.0
    %596 = vmatpush1.msra.mxu0 0.0
    %597 = vmatprep.subr.mxu0 0.0
    %598 = vmatpush1.msra.mxu0 0.0
    %599 = vmatprep.subr.mxu0 0.0
    %600 = vmatpush1.msra.mxu0 0.0
    %601 = vmatprep.subr.mxu0 0.0
    %602 = vmatpush1.msra.mxu0 0.0
    %603 = vmatprep.subr.mxu0 0.0
    %604 = vmatpush1.msra.mxu0 0.0
    %605 = vmatprep.subr.mxu0 0.0
    %606 = vmatpush1.msra.mxu0 0.0
    %607 = vmatprep.subr.mxu0 0.0
    %608 = vmatpush1.msra.mxu0 0.0
    %609 = vmatprep.subr.mxu0 0.0
    %610 = vmatpush1.msra.mxu0 0.0
    %611 = vmatprep.subr.mxu0 0.0
    %612 = vmatpush1.msra.mxu0 0.0
    %613 = vmatprep.subr.mxu0 0.0
    %614 = vmatpush1.msra.mxu0 0.0
    %615 = vmatprep.subr.mxu0 0.0
    %616 = vmatpush1.msra.mxu0 0.0
    %617 = vmatprep.mubr.f32.mxu0 0.0
    %618 = vmatmul.mubr.f32.gmra.mrb[0].mxu0 %v551
    %v619 = vpop.f32.mrb[0].mxu0
    %v620 = vadd.f32 0.0, %v619
    %v621 = vpop.f32.mrb[0].mxu0
    %622 = vdwg.mxu0
    %v623 = vmax.f32 %v620, 0.0
    %v624 = vrot.slane %v623, 4
    %v625 = vadd.f32 %v623, %v624
    %v626 = vrot.slane %v625, 6
    %v627 = vadd.f32 %v625, %v626
    %v628 = vrot.slane %v627, 7
    %v629 = vadd.f32 %v627, %v628
    %v630 = vmul.f32 %v623, %v623
    %v631 = vrot.slane %v630, 4
    %v632 = vadd.f32 %v630, %v631
    %v633 = vrot.slane %v632, 6
    %v634 = vadd.f32 %v632, %v633
    %v635 = vrot.slane %v634, 7
    %v636 = vadd.f32 %v634, %v635
    %v637 = vmul.f32 %v629, 0.125
    %v638 = vmul.f32 %v636, 0.125
    %v639 = vmul.f32 %v637, %v637
    %v640 = vsub.f32 %v638, %v639
    %v641 = vmax.f32 %v640, 0.0
    %v642 = vsub.f32 %v623, %v637
    %v643 = vadd.f32 %v641, 1e-05
    %v644 = vrsqrt.pop %v643
    %v645 = vmul.f32 %v642, %v644
    %s646 = scalar_lea.vmem [#allocation5], 384
    %v647 = vld [vmem:[%s646] sm:$0xff]
    %v648 = vld [vmem:[%s646 + $0x8] sm:$0xff]
    %v649 = vld [vmem:[%s646 + $0x10] sm:$0xff]
    %v650 = vld [vmem:[%s646 + $0x18] sm:$0xff]
    %v651 = vld [vmem:[%s646 + $0x20] sm:$0xff]
    %v652 = vld [vmem:[%s646 + $0x28] sm:$0xff]
    %v653 = vld [vmem:[%s646 + $0x30] sm:$0xff]
    %v654 = vld [vmem:[%s646 + $0x38] sm:$0xff]
    %v656 = vsel %vm47, %v645, 0
    %658 = vmatprep.subr.mxu0 0.0
    %659 = vmatpush1.msra.mxu0 %v647
    %660 = vmatprep.subr.mxu0 0.0
    %661 = vmatpush1.msra.mxu0 %v648
    %662 = vmatprep.subr.mxu0 0.0
    %663 = vmatpush1.msra.mxu0 %v649
    %664 = vmatprep.subr.mxu0 0.0
    %665 = vmatpush1.msra.mxu0 %v650
    %666 = vmatprep.subr.mxu0 0.0
    %667 = vmatpush1.msra.mxu0 %v651
    %668 = vmatprep.subr.mxu0 0.0
    %669 = vmatpush1.msra.mxu0 %v652
    %670 = vmatprep.subr.mxu0 0.0
    %671 = vmatpush1.msra.mxu0 %v653
    %672 = vmatprep.subr.mxu0 0.0
    %673 = vmatpush1.msra.mxu0 %v654
    %674 = vmatprep.subr.mxu0 0.0
    %675 = vmatpush1.msra.mxu0 0.0
    %676 = vmatprep.subr.mxu0 0.0
    %677 = vmatpush1.msra.mxu0 0.0
    %678 = vmatprep.subr.mxu0 0.0
    %679 = vmatpush1.msra.mxu0 0.0
    %680 = vmatprep.subr.mxu0 0.0
    %681 = vmatpush1.msra.mxu0 0.0
    %682 = vmatprep.subr.mxu0 0.0
    %683 = vmatpush1.msra.mxu0 0.0
    %684 = vmatprep.subr.mxu0 0.0
    %685 = vmatpush1.msra.mxu0 0.0
    %686 = vmatprep.subr.mxu0 0.0
    %687 = vmatpush1.msra.mxu0 0.0
    %688 = vmatprep.subr.mxu0 0.0
    %689 = vmatpush1.msra.mxu0 0.0
    %690 = vmatprep.subr.mxu0 0.0
    %691 = vmatpush1.msra.mxu0 0.0
    %692 = vmatprep.subr.mxu0 0.0
    %693 = vmatpush1.msra.mxu0 0.0
    %694 = vmatprep.subr.mxu0 0.0
    %695 = vmatpush1.msra.mxu0 0.0
    %696 = vmatprep.subr.mxu0 0.0
    %697 = vmatpush1.msra.mxu0 0.0
    %698 = vmatprep.subr.mxu0 0.0
    %699 = vmatpush1.msra.mxu0 0.0
    %700 = vmatprep.subr.mxu0 0.0
    %701 = vmatpush1.msra.mxu0 0.0
    %702 = vmatprep.subr.mxu0 0.0
    %703 = vmatpush1.msra.mxu0 0.0
    %704 = vmatprep.subr.mxu0 0.0
    %705 = vmatpush1.msra.mxu0 0.0
    %706 = vmatprep.subr.mxu0 0.0
    %707 = vmatpush1.msra.mxu0 0.0
    %708 = vmatprep.subr.mxu0 0.0
    %709 = vmatpush1.msra.mxu0 0.0
    %710 = vmatprep.subr.mxu0 0.0
    %711 = vmatpush1.msra.mxu0 0.0
    %712 = vmatprep.subr.mxu0 0.0
    %713 = vmatpush1.msra.mxu0 0.0
    %714 = vmatprep.subr.mxu0 0.0
    %715 = vmatpush1.msra.mxu0 0.0
    %716 = vmatprep.subr.mxu0 0.0
    %717 = vmatpush1.msra.mxu0 0.0
    %718 = vmatprep.subr.mxu0 0.0
    %719 = vmatpush1.msra.mxu0 0.0
    %720 = vmatprep.subr.mxu0 0.0
    %721 = vmatpush1.msra.mxu0 0.0
    %722 = vmatprep.mubr.f32.mxu0 0.0
    %723 = vmatmul.mubr.f32.gmra.mrb[0].mxu0 %v656
    %v724 = vpop.f32.mrb[0].mxu0
    %v725 = vadd.f32 0.0, %v724
    %v726 = vpop.f32.mrb[0].mxu0
    %727 = vdwg.mxu0
    %v728 = vmax.f32 %v725, 0.0
    %v729 = vrot.slane %v728, 4
    %v730 = vadd.f32 %v728, %v729
    %v731 = vrot.slane %v730, 6
    %v732 = vadd.f32 %v730, %v731
    %v733 = vrot.slane %v732, 7
    %v734 = vadd.f32 %v732, %v733
    %v735 = vmul.f32 %v728, %v728
    %v736 = vrot.slane %v735, 4
    %v737 = vadd.f32 %v735, %v736
    %v738 = vrot.slane %v737, 6
    %v739 = vadd.f32 %v737, %v738
    %v740 = vrot.slane %v739, 7
    %v741 = vadd.f32 %v739, %v740
    %v742 = vmul.f32 %v734, 0.125
    %v743 = vmul.f32 %v741, 0.125
    %v744 = vmul.f32 %v742, %v742
    %v745 = vsub.f32 %v743, %v744
    %v746 = vmax.f32 %v745, 0.0
    %v747 = vsub.f32 %v728, %v742
    %v748 = vadd.f32 %v746, 1e-05
    %v749 = vrsqrt.pop %v748
    %v750 = vmul.f32 %v747, %v749
    %s751 = scalar_lea.vmem [#allocation5], 448
    %v752 = vld [vmem:[%s751] sm:$0xff]
    %v753 = vld [vmem:[%s751 + $0x8] sm:$0xff]
    %v754 = vld [vmem:[%s751 + $0x10] sm:$0xff]
    %v755 = vld [vmem:[%s751 + $0x18] sm:$0xff]
    %v756 = vld [vmem:[%s751 + $0x20] sm:$0xff]
    %v757 = vld [vmem:[%s751 + $0x28] sm:$0xff]
    %v758 = vld [vmem:[%s751 + $0x30] sm:$0xff]
    %v759 = vld [vmem:[%s751 + $0x38] sm:$0xff]
    %v761 = vsel %vm47, %v750, 0
    %763 = vmatprep.subr.mxu0 0.0
    %764 = vmatpush1.msra.mxu0 %v752
    %765 = vmatprep.subr.mxu0 0.0
    %766 = vmatpush1.msra.mxu0 %v753
    %767 = vmatprep.subr.mxu0 0.0
    %768 = vmatpush1.msra.mxu0 %v754
    %769 = vmatprep.subr.mxu0 0.0
    %770 = vmatpush1.msra.mxu0 %v755
    %771 = vmatprep.subr.mxu0 0.0
    %772 = vmatpush1.msra.mxu0 %v756
    %773 = vmatprep.subr.mxu0 0.0
    %774 = vmatpush1.msra.mxu0 %v757
    %775 = vmatprep.subr.mxu0 0.0
    %776 = vmatpush1.msra.mxu0 %v758
    %777 = vmatprep.subr.mxu0 0.0
    %778 = vmatpush1.msra.mxu0 %v759
    %779 = vmatprep.subr.mxu0 0.0
    %780 = vmatpush1.msra.mxu0 0.0
    %781 = vmatprep.subr.mxu0 0.0
    %782 = vmatpush1.msra.mxu0 0.0
    %783 = vmatprep.subr.mxu0 0.0
    %784 = vmatpush1.msra.mxu0 0.0
    %785 = vmatprep.subr.mxu0 0.0
    %786 = vmatpush1.msra.mxu0 0.0
    %787 = vmatprep.subr.mxu0 0.0
    %788 = vmatpush1.msra.mxu0 0.0
    %789 = vmatprep.subr.mxu0 0.0
    %790 = vmatpush1.msra.mxu0 0.0
    %791 = vmatprep.subr.mxu0 0.0
    %792 = vmatpush1.msra.mxu0 0.0
    %793 = vmatprep.subr.mxu0 0.0
    %794 = vmatpush1.msra.mxu0 0.0
    %795 = vmatprep.subr.mxu0 0.0
    %796 = vmatpush1.msra.mxu0 0.0
    %797 = vmatprep.subr.mxu0 0.0
    %798 = vmatpush1.msra.mxu0 0.0
    %799 = vmatprep.subr.mxu0 0.0
    %800 = vmatpush1.msra.mxu0 0.0
    %801 = vmatprep.subr.mxu0 0.0
    %802 = vmatpush1.msra.mxu0 0.0
    %803 = vmatprep.subr.mxu0 0.0
    %804 = vmatpush1.msra.mxu0 0.0
    %805 = vmatprep.subr.mxu0 0.0
    %806 = vmatpush1.msra.mxu0 0.0
    %807 = vmatprep.subr.mxu0 0.0
    %808 = vmatpush1.msra.mxu0 0.0
    %809 = vmatprep.subr.mxu0 0.0
    %810 = vmatpush1.msra.mxu0 0.0
    %811 = vmatprep.subr.mxu0 0.0
    %812 = vmatpush1.msra.mxu0 0.0
    %813 = vmatprep.subr.mxu0 0.0
    %814 = vmatpush1.msra.mxu0 0.0
    %815 = vmatprep.subr.mxu0 0.0
    %816 = vmatpush1.msra.mxu0 0.0
    %817 = vmatprep.subr.mxu0 0.0
    %818 = vmatpush1.msra.mxu0 0.0
    %819 = vmatprep.subr.mxu0 0.0
    %820 = vmatpush1.msra.mxu0 0.0
    %821 = vmatprep.subr.mxu0 0.0
    %822 = vmatpush1.msra.mxu0 0.0
    %823 = vmatprep.subr.mxu0 0.0
    %824 = vmatpush1.msra.mxu0 0.0
    %825 = vmatprep.subr.mxu0 0.0
    %826 = vmatpush1.msra.mxu0 0.0
    %827 = vmatprep.mubr.f32.mxu0 0.0
    %828 = vmatmul.mubr.f32.gmra.mrb[0].mxu0 %v761
    %v829 = vpop.f32.mrb[0].mxu0
    %v830 = vadd.f32 0.0, %v829
    %v831 = vpop.f32.mrb[0].mxu0
    %832 = vdwg.mxu0
    %834 = vrot.lane.b32.xlu0 %v830, 64
    %v835 = vpop.permute.xlu0 %834
    %v837 = vsel %vm47, %v433, %v835
    %838 = vst [vmem:[#allocation7] sm:$0xff] %v837
    // Predicated region
    $region18: #{tpu_custom_call.1} parent=1 // pred_check
      _
    $region19: #{tpu_custom_call.1} parent=1 // pred_check_branch
      %840 = sbr.rel (0) target = $region21
    $region20: #{tpu_custom_call.1} parent=1 // pred_region
      %s842 = ssub.s32 128, 128
      %843 = vsyncadd [#allocation4], %s842
      %s845 = sshll.u32 [#allocation7], 4
      %s846 = int_to_ptr.vmem [resolvable:$true] %s845
      %848 = dma.vmem_to_hbm [thread:$0]  %s846, 128, %s2, [#allocation4]
    $region21: #{tpu_custom_call.1} parent=1 // pred_fallthru
      _
    // Predicated region
    $region22: #{tpu_custom_call.1} parent=1 // pred_check
      _
    $region23: #{tpu_custom_call.1} parent=1 // pred_check_branch
      %850 = sbr.rel (0) target = $region25
    $region24: #{tpu_custom_call.1} parent=1 // pred_region
      %851 = dma.done [#allocation4], 128
    $region25: #{tpu_custom_call.1} parent=1 // pred_fallthru
      _
    %852 = vsyncpa [#allocation3], 1
    %853 = vsyncpa [#allocation6], 1
    %854 = vsyncpa [#allocation4], 1

</llo_original>
